<compile_context>
chip_gen: v5e
topology: v5e:2x2
jax: 0.10.0
libtpu: 0.0.40
codegen_flags: <defaults>
</compile_context>

<pallas_src>
import functools

import jax
import jax.numpy as jnp
from jax.experimental import pallas as pl
from jax.experimental.pallas import tpu as pltpu

IN_DIM = 28 * 28     # 784
HID_DIM = 100        # logical hidden width (matches the PyTorch module)
HID_PAD = 128        # lane-aligned hidden width used inside the kernel
OUT_DIM = 10


def _round_up(n, m):
    return ((n + m - 1) // m) * m


def mlp_kernel(x_ref, w1_ref, b1_ref, w2_ref, b2_ref, o_ref):
    # Layer 1: (TB, 784) @ (784, 128) on the MXU; bf16 operands, f32 accumulate.
    h = jnp.dot(x_ref[...].astype(jnp.bfloat16), w1_ref[...],
                preferred_element_type=jnp.float32)
    h = jnp.maximum(h + b1_ref[...], 0.0)            # bias + ReLU in f32 (VPU)
    # Layer 2: (TB, 128) @ (128, 10); ~0.6% of the FLOPs, keep it on the MXU.
    o = jnp.dot(h.astype(jnp.bfloat16), w2_ref[...],
                preferred_element_type=jnp.float32)
    o_ref[...] = jnp.maximum(o + b2_ref[...], 0.0).astype(o_ref.dtype)


def prepare_params(w1, b1, w2, b2):
    """One-time parameter prep (hoisted out of the per-call path).

    Pads the hidden dim 100 -> 128 with zeros (numerically exact) and casts
    weights to bf16 for the MXU; biases stay f32. Weight layout is (in, out),
    i.e. the transpose of torch's nn.Linear weight."""
    w1p = jnp.zeros((IN_DIM, HID_PAD), jnp.bfloat16).at[:, :HID_DIM].set(
        w1.astype(jnp.bfloat16))
    b1p = jnp.zeros((1, HID_PAD), jnp.float32).at[0, :HID_DIM].set(
        b1.astype(jnp.float32))
    w2p = jnp.zeros((HID_PAD, OUT_DIM), jnp.bfloat16).at[:HID_DIM, :].set(
        w2.astype(jnp.bfloat16))
    b2p = b2.reshape(1, OUT_DIM).astype(jnp.float32)
    return w1p, b1p, w2p, b2p


@functools.partial(jax.jit, static_argnames=("tile_b",))
def sequential_forward(x, w1p, b1p, w2p, b2p, *, tile_b=4096):
    """x: (B, 784) f32; prepared params from prepare_params() -> (B, 10) f32."""
    B = x.shape[0]

    # Clamp the tile so the grid has >= 2 steps when the batch allows it
    # (keeps both v7x TensorCores busy; harmless on v5e/v6e), while keeping
    # tile_b a multiple of 8 (f32 sublane).
    tile_b = int(min(tile_b, max(8, _round_up(pl.cdiv(B, 2), 8))))
    n_tiles = pl.cdiv(B, tile_b)

    # VMEM budget: double-buffered x / out tiles, resident bf16 weights, and
    # the explicit in-kernel temporaries (bf16 copy of the x tile, h in f32
    # and bf16, f32 result before the store).
    vmem_bytes = (
        2 * tile_b * IN_DIM * 4                            # x tile f32, dbl-buf
        + tile_b * IN_DIM * 2                              # bf16 copy of x tile
        + 2 * tile_b * OUT_DIM * 4                         # out tile, dbl-buf
        + 2 * (IN_DIM * HID_PAD + HID_PAD * OUT_DIM) * 2   # bf16 weights
        + 2 * (HID_PAD + OUT_DIM) * 4                      # biases
        + tile_b * HID_PAD * 4                             # h (f32)
        + tile_b * HID_PAD * 2                             # h bf16 cast
        + tile_b * OUT_DIM * 4                             # f32 result pre-store
    )
    try:
        vmem_cap = int(pltpu.get_tpu_info().vmem_capacity_bytes)
    except Exception:
        vmem_cap = 64 * 1024 * 1024                        # conservative (v7x per-TC)
    vmem_limit = max(32 * 1024 * 1024, int(vmem_bytes * 1.25) + (2 << 20))
    vmem_limit = min(vmem_limit, int(vmem_cap * 3 // 4))

    cost = pl.CostEstimate(
        flops=int(2 * B * IN_DIM * HID_PAD + 2 * B * HID_PAD * OUT_DIM),
        transcendentals=0,
        bytes_accessed=int(
            B * IN_DIM * 4 + B * OUT_DIM * 4
            + (IN_DIM * HID_PAD + HID_PAD * OUT_DIM) * 2
            + (HID_PAD + OUT_DIM) * 4),
    )

    return pl.pallas_call(
        mlp_kernel,
        out_shape=jax.ShapeDtypeStruct((B, OUT_DIM), jnp.float32),
        grid=(n_tiles,),
        in_specs=[
            pl.BlockSpec((tile_b, IN_DIM), lambda i: (i, 0)),     # x: streamed
            pl.BlockSpec((IN_DIM, HID_PAD), lambda i: (0, 0)),    # w1: resident
            pl.BlockSpec((1, HID_PAD), lambda i: (0, 0)),         # b1: resident
            pl.BlockSpec((HID_PAD, OUT_DIM), lambda i: (0, 0)),   # w2: resident
            pl.BlockSpec((1, OUT_DIM), lambda i: (0, 0)),         # b2: resident
        ],
        out_specs=pl.BlockSpec((tile_b, OUT_DIM), lambda i: (i, 0)),
        compiler_params=pltpu.CompilerParams(
            dimension_semantics=("parallel",),
            vmem_limit_bytes=vmem_limit,
        ),
        cost_estimate=cost,
    )(x, w1p, b1p, w2p, b2p)


def init_params(key):
    """PyTorch nn.Linear default init: U(-1/sqrt(fan_in), 1/sqrt(fan_in))."""
    k1, k2, k3, k4 = jax.random.split(key, 4)
    lim1 = 1.0 / jnp.sqrt(jnp.float32(IN_DIM))
    lim2 = 1.0 / jnp.sqrt(jnp.float32(HID_DIM))
    w1 = jax.random.uniform(k1, (IN_DIM, HID_DIM), jnp.float32, -lim1, lim1)
    b1 = jax.random.uniform(k2, (HID_DIM,), jnp.float32, -lim1, lim1)
    w2 = jax.random.uniform(k3, (HID_DIM, OUT_DIM), jnp.float32, -lim2, lim2)
    b2 = jax.random.uniform(k4, (OUT_DIM,), jnp.float32, -lim2, lim2)
    return w1, b1, w2, b2


if __name__ == "__main__":
    key = jax.random.PRNGKey(0)
    kx, kp = jax.random.split(key)
    batch = 20                       # deliberately NOT a multiple of any tile
    x = jax.random.normal(kx, (batch, IN_DIM), jnp.float32)
    w1, b1, w2, b2 = init_params(kp)
    w1p, b1p, w2p, b2p = prepare_params(w1, b1, w2, b2)   # one-time prep

    # References.
    h_ref = jnp.maximum(
        jnp.dot(x.astype(jnp.bfloat16), w1.astype(jnp.bfloat16),
                preferred_element_type=jnp.float32) + b1, 0.0)
    ref_bf16 = jnp.maximum(
        jnp.dot(h_ref.astype(jnp.bfloat16), w2.astype(jnp.bfloat16),
                preferred_element_type=jnp.float32) + b2, 0.0)
    ref_f32 = jnp.maximum(jnp.maximum(x @ w1 + b1, 0.0) @ w2 + b2, 0.0)

    # Path 1: explicit small tile -> grid=(3,), ragged last block (20 = 8+8+4).
    out = sequential_forward(x, w1p, b1p, w2p, b2p, tile_b=8)
    out = jax.block_until_ready(out)
    assert out.shape == (batch, OUT_DIM)
    assert jnp.allclose(out, ref_bf16, atol=1e-2, rtol=1e-2)
    assert jnp.allclose(out, ref_f32, atol=5e-2, rtol=5e-2)

    # Path 2: default tile -> clamped to 16 for a 2-step grid, ragged last
    # block (20 = 16+4); checks the no-padding ragged write path again.
    out2 = sequential_forward(x, w1p, b1p, w2p, b2p)
    out2 = jax.block_until_ready(out2)
    assert out2.shape == (batch, OUT_DIM)
    assert jnp.allclose(out2, ref_bf16, atol=1e-2, rtol=1e-2)
    assert jnp.allclose(out2, out, atol=1e-6, rtol=1e-6)

    print("KERNEL_OK")
</pallas_src>

<mosaic_0001>
module attributes {stable_mosaic.version = 11 : i64} {
  func.func @mlp_kernel(%arg0: i32, %arg1: memref<8x784xf32, #tpu.memory_space<vmem>>, %arg2: memref<784x128xbf16, #tpu.memory_space<vmem>>, %arg3: memref<1x128xf32, #tpu.memory_space<vmem>>, %arg4: memref<128x10xbf16, #tpu.memory_space<vmem>>, %arg5: memref<1x10xf32, #tpu.memory_space<vmem>>, %arg6: memref<8x10xf32, #tpu.memory_space<vmem>>) attributes {dimension_semantics = [#tpu.dimension_semantics<parallel>], iteration_bounds = array<i64: 3>, scalar_prefetch = 0 : i64, scratch_operands = 0 : i64, tpu.core_type = #tpu.core_type<tc>, window_params = [{transform_indices = @transform_0, window_bounds = array<i64: 8, 784>}, {pipeline_mode = #tpu.pipeline_mode<synchronous>, transform_indices = @transform_1, window_bounds = array<i64: 784, 128>}, {pipeline_mode = #tpu.pipeline_mode<synchronous>, transform_indices = @transform_2, window_bounds = array<i64: 1, 128>}, {pipeline_mode = #tpu.pipeline_mode<synchronous>, transform_indices = @transform_3, window_bounds = array<i64: 128, 10>}, {pipeline_mode = #tpu.pipeline_mode<synchronous>, transform_indices = @transform_4, window_bounds = array<i64: 1, 10>}, {transform_indices = @transform_5, window_bounds = array<i64: 8, 10>}]} {
    %c0 = arith.constant 0 : index
    %c0_0 = arith.constant 0 : index
    %0 = vector.load %arg1[%c0, %c0_0] : memref<8x784xf32, #tpu.memory_space<vmem>>, vector<8x784xf32>
    %1 = arith.truncf %0 : vector<8x784xf32> to vector<8x784xbf16>
    %c0_1 = arith.constant 0 : index
    %c0_2 = arith.constant 0 : index
    %2 = vector.load %arg2[%c0_1, %c0_2] : memref<784x128xbf16, #tpu.memory_space<vmem>>, vector<784x128xbf16>
    %cst = arith.constant dense<0.000000e+00> : vector<8x128xf32>
    %3 = tpu.matmul %1, %2, %cst {dimension_numbers = #tpu.dot_dimension_numbers<[1], [0], [0], [1], [0, 0, 1, 1], [], []>} : vector<8x784xbf16>, vector<784x128xbf16>, vector<8x128xf32> -> vector<8x128xf32>
    %c0_3 = arith.constant 0 : index
    %c0_4 = arith.constant 0 : index
    %4 = vector.load %arg3[%c0_3, %c0_4] : memref<1x128xf32, #tpu.memory_space<vmem>>, vector<1x128xf32>
    %5 = vector.broadcast %4 : vector<1x128xf32> to vector<8x128xf32>
    %6 = arith.addf %3, %5 : vector<8x128xf32>
    %cst_5 = arith.constant 0.000000e+00 : f32
    %7 = vector.broadcast %cst_5 : f32 to vector<8x128xf32>
    %8 = arith.maximumf %6, %7 : vector<8x128xf32>
    %9 = arith.truncf %8 : vector<8x128xf32> to vector<8x128xbf16>
    %c0_6 = arith.constant 0 : index
    %c0_7 = arith.constant 0 : index
    %10 = vector.load %arg4[%c0_6, %c0_7] : memref<128x10xbf16, #tpu.memory_space<vmem>>, vector<128x10xbf16>
    %cst_8 = arith.constant dense<0.000000e+00> : vector<8x10xf32>
    %11 = tpu.matmul %9, %10, %cst_8 {dimension_numbers = #tpu.dot_dimension_numbers<[1], [0], [0], [1], [0, 0, 1, 1], [], []>} : vector<8x128xbf16>, vector<128x10xbf16>, vector<8x10xf32> -> vector<8x10xf32>
    %c0_9 = arith.constant 0 : index
    %c0_10 = arith.constant 0 : index
    %12 = vector.load %arg5[%c0_9, %c0_10] : memref<1x10xf32, #tpu.memory_space<vmem>>, vector<1x10xf32>
    %13 = vector.broadcast %12 : vector<1x10xf32> to vector<8x10xf32>
    %14 = arith.addf %11, %13 : vector<8x10xf32>
    %cst_11 = arith.constant 0.000000e+00 : f32
    %15 = vector.broadcast %cst_11 : f32 to vector<8x10xf32>
    %16 = arith.maximumf %14, %15 : vector<8x10xf32>
    %c0_12 = arith.constant 0 : index
    %c0_13 = arith.constant 0 : index
    %17 = vector.load %arg6[%c0_12, %c0_13] : memref<8x10xf32, #tpu.memory_space<vmem>>, vector<8x10xf32>
    tpu.vector_store %arg6[%c0_12, %c0_13], %16 {strides = array<i32>} : memref<8x10xf32, #tpu.memory_space<vmem>>, vector<8x10xf32>,
    return
  }
  func.func @transform_0(%arg0: i32) -> (i32, i32) {
    %c0_i32 = arith.constant 0 : i32
    %c0_i32_0 = arith.constant 0 : i32
    return %arg0, %c0_i32 : i32, i32
  }
  func.func @transform_1(%arg0: i32) -> (i32, i32) {
    %c0_i32 = arith.constant 0 : i32
    %c0_i32_0 = arith.constant 0 : i32
    %c0_i32_1 = arith.constant 0 : i32
    return %c0_i32, %c0_i32_0 : i32, i32
  }
  func.func @transform_2(%arg0: i32) -> (i32, i32) {
    %c0_i32 = arith.constant 0 : i32
    %c0_i32_0 = arith.constant 0 : i32
    %c0_i32_1 = arith.constant 0 : i32
    return %c0_i32, %c0_i32_0 : i32, i32
  }
  func.func @transform_3(%arg0: i32) -> (i32, i32) {
    %c0_i32 = arith.constant 0 : i32
    %c0_i32_0 = arith.constant 0 : i32
    %c0_i32_1 = arith.constant 0 : i32
    return %c0_i32, %c0_i32_0 : i32, i32
  }
  func.func @transform_4(%arg0: i32) -> (i32, i32) {
    %c0_i32 = arith.constant 0 : i32
    %c0_i32_0 = arith.constant 0 : i32
    %c0_i32_1 = arith.constant 0 : i32
    return %c0_i32, %c0_i32_0 : i32, i32
  }
  func.func @transform_5(%arg0: i32) -> (i32, i32) {
    %c0_i32 = arith.constant 0 : i32
    %c0_i32_0 = arith.constant 0 : i32
    return %arg0, %c0_i32 : i32, i32
  }
}

</mosaic_0001>

<llo_original>
// kernel: sequential_forward.1
$region0: #{sequential_forward.1}
  #allocation0 [shape = 'u32[]', space=smem, size = 0x4, offset = 0x4, fixed_abs, tag = 'smem constant byte address 0x4 - core index']
  #allocation1 [shape = 'u32[72,128]{1,0:T(1,128)}', space=vmem, size = 0x9000, scoped, tag = 'internal scratch']
  %s0 = inlined_call_operand.hbm [shape: f32[20,784], index: 0, kind: input, shape index: {}]
  %s1 = inlined_call_operand.hbm [shape: bf16[784,128], index: 1, kind: input, shape index: {}]
  %s2 = inlined_call_operand.vmem [shape: f32[1,128], index: 2, kind: input, shape index: {}]
  %s3 = inlined_call_operand.vmem [shape: bf16[128,10], index: 3, kind: input, shape index: {}]
  %s4 = inlined_call_operand.vmem [shape: f32[1,10], index: 4, kind: input, shape index: {}]
  %s5 = inlined_call_operand.vmem [shape: f32[20,10], index: 5, kind: output, shape index: {}]
  %s6 = sld [smem:[#allocation0]]
  $region61: #{sequential_forward.1} parent=0
    _
  %s8 = ssub.s32 1, %s6
  %s9 = scalar_select 0, %s8, %s6
  $region1: #{sequential_forward.1} parent=0
    #allocation2 [shape = 'u8[57344]{0}', space=vmem, size = 0xe000, scoped, tag = 'input window, operand 0']
    #allocation3 [shape = 's32[2]{0}', space=sflag, size = 0x8, scoped, tag = 'scoped memory for sequential_forward.1']
    #allocation4 [shape = 'u8[200704]{0}', space=vmem, size = 0x31000, scoped, tag = 'input window, operand 1, single buffered']
    #allocation5 [shape = 's32[1]{0}', space=sflag, size = 0x4, scoped, tag = 'scoped memory for sequential_forward.1']
    %10 = vsyncpa [#allocation3], 0
    %s11 = scalar_lea.sflag [#allocation3], 1
    %12 = vsyncpa %s11, 0
    %13 = vsyncpa [#allocation5], 0
    loop: start=0, step=1, limit=5
    $region2: #{sequential_forward.1} parent=1 // loop_pre_header
      _
    $region3: #{sequential_forward.1} parent=1 // loop_header
      %s15 = sphi 0, %s19
      %p16 = scmp.ge.s32.totalorder %s15, 5
      %s25 = sphi 0, %s27
      %s28 = sphi 0, %s25
      %s29 = sphi 0, %s28
      %s45 = sphi 0, %s29
      %s49 = sphi 0, %s49
      %s51 = sphi 0, %s49
      %s52 = sphi 0, %s51
      %s66 = sphi 0, %s52
      %s70 = sphi 0, %s70
      %s72 = sphi 0, %s70
      %s73 = sphi 0, %s72
      %s87 = sphi 0, %s73
      %s91 = sphi 0, %s91
      %s93 = sphi 0, %s91
      %s94 = sphi 0, %s93
      %s108 = sphi 0, %s94
      %s112 = sphi 0, %s112
      %s114 = sphi 0, %s112
      %s115 = sphi 0, %s114
      %s129 = sphi 0, %s115
      %s135 = sphi 0, %s137
      %s138 = sphi 0, %s135
      %s139 = sphi 0, %s138
      %s155 = sphi 0, %s139
    $region4: #{sequential_forward.1} parent=1 // loop_header_branch
      %18 = sbr.rel (%p16) target = $region8
    $region5: #{sequential_forward.1} parent=1 // loop_body
      %s20 = ssub.s32 %s15, 1
      %s21 = ssub.s32 %s15, 2
      %s22 = sadd.s32 %s15, 1
      %s23 = ssub.s32 %s15, %s22
      %p24 = scmp.eq.s32.totalorder %s23, 0
      %s26 = sadd.s32 %s25, 1
      %s27 = scalar_select %p24, %s25, %s26
      %p30 = pneg %p24
      %p31 = scmp.eq.s32.totalorder %s15, 2
      %p32 = por %p30, %p31
      %p33 = scmp.ne.s32.totalorder %s25, %s28
      %p34 = scmp.eq.s32.totalorder %s15, 0
      %p35 = por %p33, %p34
      %p36 = scmp.ne.s32.totalorder %s25, %s28
      %p37 = scmp.eq.s32.totalorder %s20, 2
      %p38 = por %p36, %p37
      %p39 = scmp.ne.s32.totalorder %s28, %s29
      %p40 = scmp.eq.s32.totalorder %s20, 0
      %p41 = por %p39, %p40
      %p42 = scmp.ne.s32.totalorder %s28, %s29
      %p43 = scmp.eq.s32.totalorder %s21, 2
      %p44 = por %p42, %p43
      %p46 = scmp.ne.s32.totalorder %s29, %s45
      %p47 = scmp.eq.s32.totalorder %s21, 0
      %p48 = por %p46, %p47
      %s50 = sadd.s32 %s49, 1
      %p53 = scmp.eq.s32.totalorder %s15, 2
      %p54 = scmp.ne.s32.totalorder %s49, %s51
      %p55 = scmp.eq.s32.totalorder %s15, 0
      %p56 = por %p54, %p55
      %p57 = scmp.ne.s32.totalorder %s49, %s51
      %p58 = scmp.eq.s32.totalorder %s20, 2
      %p59 = por %p57, %p58
      %p60 = scmp.ne.s32.totalorder %s51, %s52
      %p61 = scmp.eq.s32.totalorder %s20, 0
      %p62 = por %p60, %p61
      %p63 = scmp.ne.s32.totalorder %s51, %s52
      %p64 = scmp.eq.s32.totalorder %s21, 2
      %p65 = por %p63, %p64
      %p67 = scmp.ne.s32.totalorder %s52, %s66
      %p68 = scmp.eq.s32.totalorder %s21, 0
      %p69 = por %p67, %p68
      %s71 = sadd.s32 %s70, 1
      %p74 = scmp.eq.s32.totalorder %s15, 2
      %p75 = scmp.ne.s32.totalorder %s70, %s72
      %p76 = scmp.eq.s32.totalorder %s15, 0
      %p77 = por %p75, %p76
      %p78 = scmp.ne.s32.totalorder %s70, %s72
      %p79 = scmp.eq.s32.totalorder %s20, 2
      %p80 = por %p78, %p79
      %p81 = scmp.ne.s32.totalorder %s72, %s73
      %p82 = scmp.eq.s32.totalorder %s20, 0
      %p83 = por %p81, %p82
      %p84 = scmp.ne.s32.totalorder %s72, %s73
      %p85 = scmp.eq.s32.totalorder %s21, 2
      %p86 = por %p84, %p85
      %p88 = scmp.ne.s32.totalorder %s73, %s87
      %p89 = scmp.eq.s32.totalorder %s21, 0
      %p90 = por %p88, %p89
      %s92 = sadd.s32 %s91, 1
      %p95 = scmp.eq.s32.totalorder %s15, 2
      %p96 = scmp.ne.s32.totalorder %s91, %s93
      %p97 = scmp.eq.s32.totalorder %s15, 0
      %p98 = por %p96, %p97
      %p99 = scmp.ne.s32.totalorder %s91, %s93
      %p100 = scmp.eq.s32.totalorder %s20, 2
      %p101 = por %p99, %p100
      %p102 = scmp.ne.s32.totalorder %s93, %s94
      %p103 = scmp.eq.s32.totalorder %s20, 0
      %p104 = por %p102, %p103
      %p105 = scmp.ne.s32.totalorder %s93, %s94
      %p106 = scmp.eq.s32.totalorder %s21, 2
      %p107 = por %p105, %p106
      %p109 = scmp.ne.s32.totalorder %s94, %s108
      %p110 = scmp.eq.s32.totalorder %s21, 0
      %p111 = por %p109, %p110
      %s113 = sadd.s32 %s112, 1
      %p116 = scmp.eq.s32.totalorder %s15, 2
      %p117 = scmp.ne.s32.totalorder %s112, %s114
      %p118 = scmp.eq.s32.totalorder %s15, 0
      %p119 = por %p117, %p118
      %p120 = scmp.ne.s32.totalorder %s112, %s114
      %p121 = scmp.eq.s32.totalorder %s20, 2
      %p122 = por %p120, %p121
      %p123 = scmp.ne.s32.totalorder %s114, %s115
      %p124 = scmp.eq.s32.totalorder %s20, 0
      %p125 = por %p123, %p124
      %p126 = scmp.ne.s32.totalorder %s114, %s115
      %p127 = scmp.eq.s32.totalorder %s21, 2
      %p128 = por %p126, %p127
      %p130 = scmp.ne.s32.totalorder %s115, %s129
      %p131 = scmp.eq.s32.totalorder %s21, 0
      %p132 = por %p130, %p131
      %s133 = ssub.s32 %s15, %s22
      %p134 = scmp.eq.s32.totalorder %s133, 0
      %s136 = sadd.s32 %s135, 1
      %s137 = scalar_select %p134, %s135, %s136
      %p140 = pneg %p134
      %p141 = scmp.eq.s32.totalorder %s15, 2
      %p142 = por %p140, %p141
      %p143 = scmp.ne.s32.totalorder %s135, %s138
      %p144 = scmp.eq.s32.totalorder %s15, 0
      %p145 = por %p143, %p144
      %p146 = scmp.ne.s32.totalorder %s135, %s138
      %p147 = scmp.eq.s32.totalorder %s20, 2
      %p148 = por %p146, %p147
      %p149 = scmp.ne.s32.totalorder %s138, %s139
      %p150 = scmp.eq.s32.totalorder %s20, 0
      %p151 = por %p149, %p150
      %p152 = scmp.ne.s32.totalorder %s138, %s139
      %p153 = scmp.eq.s32.totalorder %s21, 2
      %p154 = por %p152, %p153
      %p156 = scmp.ne.s32.totalorder %s139, %s155
      %p157 = scmp.eq.s32.totalorder %s21, 0
      %p158 = por %p156, %p157
      %p159 = scmp.le.s32.totalorder 1, %s15
      %p160 = scmp.lt.s32.totalorder %s15, 4
      %p161 = pnand %p159, %p160
      %p162 = pneg %p161
      // Predicated region
      $region9: #{sequential_forward.1} parent=5 // pred_check
        _
      $region10: #{sequential_forward.1} parent=5 // pred_check_branch
        %164 = sbr.rel (%p161) target = $region12
      $region11: #{sequential_forward.1} parent=5 // pred_region
        %s165 = ssub.s32 %s15, 1
        // Predicated region
        $region13: #{sequential_forward.1} parent=11 // pred_check
          %p166 = pneg %p62
        $region14: #{sequential_forward.1} parent=11 // pred_check_branch
          %168 = sbr.rel (%p166) target = $region16
        $region15: #{sequential_forward.1} parent=11 // pred_region
          %170 = vsyncadd [#allocation5], 0
          %s171 = sshll.u32 %s1, 4
          %s172 = int_to_ptr.hbm [resolvable:$true] %s171
          %s173 = sshll.u32 [#allocation4], 4
          %s174 = int_to_ptr.vmem [resolvable:$true] %s173
          %179 = dma.hbm_to_vmem [thread:$0]  %s172, 6272, %s174, [#allocation5], 64, 64, 4
        $region16: #{sequential_forward.1} parent=11 // pred_fallthru
          _
        // Predicated region
        $region17: #{sequential_forward.1} parent=11 // pred_check
          %p180 = pneg %p83
        $region18: #{sequential_forward.1} parent=11 // pred_check_branch
          %182 = sbr.rel (%p180) target = $region20
        $region19: #{sequential_forward.1} parent=11 // pred_region
          _
        $region20: #{sequential_forward.1} parent=11 // pred_fallthru
          _
        // Predicated region
        $region21: #{sequential_forward.1} parent=11 // pred_check
          %p183 = pneg %p104
        $region22: #{sequential_forward.1} parent=11 // pred_check_branch
          %185 = sbr.rel (%p183) target = $region24
        $region23: #{sequential_forward.1} parent=11 // pred_region
          _
        $region24: #{sequential_forward.1} parent=11 // pred_fallthru
          _
        // Predicated region
        $region25: #{sequential_forward.1} parent=11 // pred_check
          %p186 = pneg %p125
        $region26: #{sequential_forward.1} parent=11 // pred_check_branch
          %188 = sbr.rel (%p186) target = $region28
        $region27: #{sequential_forward.1} parent=11 // pred_region
          _
        $region28: #{sequential_forward.1} parent=11 // pred_fallthru
          _
      $region12: #{sequential_forward.1} parent=5 // pred_fallthru
        _
      %p189 = scmp.lt.s32.totalorder %s15, 3
      // Predicated region
      $region29: #{sequential_forward.1} parent=5 // pred_check
        %p190 = pneg %p189
      $region30: #{sequential_forward.1} parent=5 // pred_check_branch
        %192 = sbr.rel (%p190) target = $region32
      $region31: #{sequential_forward.1} parent=5 // pred_region
        // Predicated region
        $region33: #{sequential_forward.1} parent=31 // pred_check
          %p193 = pneg %p35
        $region34: #{sequential_forward.1} parent=31 // pred_check_branch
          %195 = sbr.rel (%p193) target = $region36
        $region35: #{sequential_forward.1} parent=31 // pred_region
          %s196 = sand.u32 %s25, 1
          %s197 = scalar_lea.sflag [#allocation3], %s196
          %s198 = sand.u32 %s25, 1
          %s199 = smul.addr %s198, 56
          %s200 = scalar_lea.vmem [#allocation2], %s199
          %202 = vsyncadd %s197, 0
          %s203 = smul.addr %s15, 7
          %s204 = smul.addr %s203, 8
          %s205 = scalar_lea.hbm %s0, %s204
          %s207 = sshll.u32 %s205, 4
          %s208 = int_to_ptr.hbm [resolvable:$true] %s207
          %s209 = sshll.u32 %s200, 4
          %s210 = int_to_ptr.vmem [resolvable:$true] %s209
          %212 = dma.hbm_to_vmem [thread:$0]  %s208, 896, %s210, %s197
        $region36: #{sequential_forward.1} parent=31 // pred_fallthru
          _
      $region32: #{sequential_forward.1} parent=5 // pred_fallthru
        _
      %p213 = scmp.le.s32.totalorder 1, %s15
      %p214 = scmp.lt.s32.totalorder %s15, 4
      %p215 = pnand %p213, %p214
      %p216 = pneg %p215
      // Predicated region
      $region37: #{sequential_forward.1} parent=5 // pred_check
        _
      $region38: #{sequential_forward.1} parent=5 // pred_check_branch
        %218 = sbr.rel (%p215) target = $region40
      $region39: #{sequential_forward.1} parent=5 // pred_region
        %s219 = ssub.s32 %s15, 1
        %s220 = sand.u32 %s28, 1
        %s221 = scalar_lea.sflag [#allocation3], %s220
        %s222 = sand.u32 %s28, 1
        %s223 = smul.addr %s222, 56
        %s224 = scalar_lea.vmem [#allocation2], %s223
        // Predicated region
        $region41: #{sequential_forward.1} parent=39 // pred_check
          %p225 = pneg %p41
        $region42: #{sequential_forward.1} parent=39 // pred_check_branch
          %227 = sbr.rel (%p225) target = $region44
        $region43: #{sequential_forward.1} parent=39 // pred_region
          %229 = dma.done %s221, 896
        $region44: #{sequential_forward.1} parent=39 // pred_fallthru
          _
        // Predicated region
        $region45: #{sequential_forward.1} parent=39 // pred_check
          %p230 = pneg %p62
        $region46: #{sequential_forward.1} parent=39 // pred_check_branch
          %232 = sbr.rel (%p230) target = $region48
        $region47: #{sequential_forward.1} parent=39 // pred_region
          %234 = dma.done [#allocation5], 6272
        $region48: #{sequential_forward.1} parent=39 // pred_fallthru
          _
        %s235 = sand.u32 %s28, 1
        %s236 = scalar_lea.sflag [#allocation3], %s235
        %s237 = sand.u32 %s28, 1
        %s238 = smul.addr %s237, 56
        %s239 = scalar_lea.vmem [#allocation2], %s238
        %p240 = pneg %p41
        %p241 = pneg %p38
        %p242 = pneg %p62
        %p243 = pneg %p59
        %p244 = pneg %p83
        %p245 = pneg %p80
        %p246 = pneg %p104
        %p247 = pneg %p101
        %p248 = pneg %p125
        %p249 = pneg %p122
        %p250 = pneg %p151
        %p251 = pneg %p148
        %p252 = scmp.lt.s32.totalorder %s20, 2
        %s253 = scalar_select %p252, %s20, 2
        %s254 = smul.addr %s253, 8
        %s255 = scalar_lea.vmem %s5, %s254
        %p256 = scmp.lt.s32.totalorder %s20, 2
        %s257 = scalar_select %p256, %s20, 2
        %s258 = smul.addr %s257, 8
        %s259 = scalar_lea.vmem %s5, %s258
        %v261 = vld [vmem:[%s224] sm:$0xff]
        %v262 = vld [vmem:[%s224 + $0x8] sm:$0xff]
        %v263 = vld [vmem:[%s224 + $0x10] sm:$0xff]
        %v264 = vld [vmem:[%s224 + $0x18] sm:$0xff]
        %v265 = vld [vmem:[%s224 + $0x20] sm:$0xff]
        %v266 = vld [vmem:[%s224 + $0x28] sm:$0xff]
        %v267 = vld [vmem:[%s224 + $0x30] sm:$0xff]
        %v268 = vpack.c.bf16 %v261, %v261
        %v269 = vpack.c.bf16 %v262, %v262
        %v270 = vpack.c.bf16 %v263, %v263
        %v271 = vpack.c.bf16 %v264, %v264
        %v272 = vpack.c.bf16 %v265, %v265
        %v273 = vpack.c.bf16 %v266, %v266
        %v274 = vpack.c.bf16 %v267, %v267
        %v275 = vld [vmem:[#allocation4] sm:$0xf]
        %v276 = vld [vmem:[#allocation4 + $0x4] sm:$0xf]
        %v277 = vld [vmem:[#allocation4 + $0x8] sm:$0xf]
        %v278 = vld [vmem:[#allocation4 + $0xc] sm:$0xf]
        %v279 = vld [vmem:[#allocation4 + $0x10] sm:$0xf]
        %v280 = vld [vmem:[#allocation4 + $0x14] sm:$0xf]
        %v281 = vld [vmem:[#allocation4 + $0x18] sm:$0xf]
        %v282 = vld [vmem:[#allocation4 + $0x1c] sm:$0xf]
        %v283 = vld [vmem:[#allocation4 + $0x20] sm:$0xf]
        %v284 = vld [vmem:[#allocation4 + $0x24] sm:$0xf]
        %v285 = vld [vmem:[#allocation4 + $0x28] sm:$0xf]
        %v286 = vld [vmem:[#allocation4 + $0x2c] sm:$0xf]
        %v287 = vld [vmem:[#allocation4 + $0x30] sm:$0xf]
        %v288 = vld [vmem:[#allocation4 + $0x34] sm:$0xf]
        %v289 = vld [vmem:[#allocation4 + $0x38] sm:$0xf]
        %v290 = vld [vmem:[#allocation4 + $0x3c] sm:$0xf]
        %v291 = vld [vmem:[#allocation4 + $0x40] sm:$0xf]
        %v292 = vld [vmem:[#allocation4 + $0x44] sm:$0xf]
        %v293 = vld [vmem:[#allocation4 + $0x48] sm:$0xf]
        %v294 = vld [vmem:[#allocation4 + $0x4c] sm:$0xf]
        %v295 = vld [vmem:[#allocation4 + $0x50] sm:$0xf]
        %v296 = vld [vmem:[#allocation4 + $0x54] sm:$0xf]
        %v297 = vld [vmem:[#allocation4 + $0x58] sm:$0xf]
        %v298 = vld [vmem:[#allocation4 + $0x5c] sm:$0xf]
        %v299 = vld [vmem:[#allocation4 + $0x60] sm:$0xf]
        %v300 = vld [vmem:[#allocation4 + $0x64] sm:$0xf]
        %v301 = vld [vmem:[#allocation4 + $0x68] sm:$0xf]
        %v302 = vld [vmem:[#allocation4 + $0x6c] sm:$0xf]
        %v303 = vld [vmem:[#allocation4 + $0x70] sm:$0xf]
        %v304 = vld [vmem:[#allocation4 + $0x74] sm:$0xf]
        %v305 = vld [vmem:[#allocation4 + $0x78] sm:$0xf]
        %v306 = vld [vmem:[#allocation4 + $0x7c] sm:$0xf]
        %v307 = vld [vmem:[#allocation4 + $0x80] sm:$0xf]
        %v308 = vld [vmem:[#allocation4 + $0x84] sm:$0xf]
        %v309 = vld [vmem:[#allocation4 + $0x88] sm:$0xf]
        %v310 = vld [vmem:[#allocation4 + $0x8c] sm:$0xf]
        %v311 = vld [vmem:[#allocation4 + $0x90] sm:$0xf]
        %v312 = vld [vmem:[#allocation4 + $0x94] sm:$0xf]
        %v313 = vld [vmem:[#allocation4 + $0x98] sm:$0xf]
        %v314 = vld [vmem:[#allocation4 + $0x9c] sm:$0xf]
        %v315 = vld [vmem:[#allocation4 + $0xa0] sm:$0xf]
        %v316 = vld [vmem:[#allocation4 + $0xa4] sm:$0xf]
        %v317 = vld [vmem:[#allocation4 + $0xa8] sm:$0xf]
        %v318 = vld [vmem:[#allocation4 + $0xac] sm:$0xf]
        %v319 = vld [vmem:[#allocation4 + $0xb0] sm:$0xf]
        %v320 = vld [vmem:[#allocation4 + $0xb4] sm:$0xf]
        %v321 = vld [vmem:[#allocation4 + $0xb8] sm:$0xf]
        %v322 = vld [vmem:[#allocation4 + $0xbc] sm:$0xf]
        %v323 = vld [vmem:[#allocation4 + $0xc0] sm:$0xf]
        %v324 = vld [vmem:[#allocation4 + $0xc4] sm:$0xf]
        %v325 = vld [vmem:[#allocation4 + $0xc8] sm:$0xf]
        %v326 = vld [vmem:[#allocation4 + $0xcc] sm:$0xf]
        %v327 = vld [vmem:[#allocation4 + $0xd0] sm:$0xf]
        %v328 = vld [vmem:[#allocation4 + $0xd4] sm:$0xf]
        %v329 = vld [vmem:[#allocation4 + $0xd8] sm:$0xf]
        %v330 = vld [vmem:[#allocation4 + $0xdc] sm:$0xf]
        %v331 = vld [vmem:[#allocation4 + $0xe0] sm:$0xf]
        %v332 = vld [vmem:[#allocation4 + $0xe4] sm:$0xf]
        %v333 = vld [vmem:[#allocation4 + $0xe8] sm:$0xf]
        %v334 = vld [vmem:[#allocation4 + $0xec] sm:$0xf]
        %v335 = vld [vmem:[#allocation4 + $0xf0] sm:$0xf]
        %v336 = vld [vmem:[#allocation4 + $0xf4] sm:$0xf]
        %v337 = vld [vmem:[#allocation4 + $0xf8] sm:$0xf]
        %v338 = vld [vmem:[#allocation4 + $0xfc] sm:$0xf]
        %v339 = vld [vmem:[#allocation4 + $0x100] sm:$0xf]
        %v340 = vld [vmem:[#allocation4 + $0x104] sm:$0xf]
        %v341 = vld [vmem:[#allocation4 + $0x108] sm:$0xf]
        %v342 = vld [vmem:[#allocation4 + $0x10c] sm:$0xf]
        %v343 = vld [vmem:[#allocation4 + $0x110] sm:$0xf]
        %v344 = vld [vmem:[#allocation4 + $0x114] sm:$0xf]
        %v345 = vld [vmem:[#allocation4 + $0x118] sm:$0xf]
        %v346 = vld [vmem:[#allocation4 + $0x11c] sm:$0xf]
        %v347 = vld [vmem:[#allocation4 + $0x120] sm:$0xf]
        %v348 = vld [vmem:[#allocation4 + $0x124] sm:$0xf]
        %v349 = vld [vmem:[#allocation4 + $0x128] sm:$0xf]
        %v350 = vld [vmem:[#allocation4 + $0x12c] sm:$0xf]
        %v351 = vld [vmem:[#allocation4 + $0x130] sm:$0xf]
        %v352 = vld [vmem:[#allocation4 + $0x134] sm:$0xf]
        %v353 = vld [vmem:[#allocation4 + $0x138] sm:$0xf]
        %v354 = vld [vmem:[#allocation4 + $0x13c] sm:$0xf]
        %v355 = vld [vmem:[#allocation4 + $0x140] sm:$0xf]
        %v356 = vld [vmem:[#allocation4 + $0x144] sm:$0xf]
        %v357 = vld [vmem:[#allocation4 + $0x148] sm:$0xf]
        %v358 = vld [vmem:[#allocation4 + $0x14c] sm:$0xf]
        %v359 = vld [vmem:[#allocation4 + $0x150] sm:$0xf]
        %v360 = vld [vmem:[#allocation4 + $0x154] sm:$0xf]
        %v361 = vld [vmem:[#allocation4 + $0x158] sm:$0xf]
        %v362 = vld [vmem:[#allocation4 + $0x15c] sm:$0xf]
        %v363 = vld [vmem:[#allocation4 + $0x160] sm:$0xf]
        %v364 = vld [vmem:[#allocation4 + $0x164] sm:$0xf]
        %v365 = vld [vmem:[#allocation4 + $0x168] sm:$0xf]
        %v366 = vld [vmem:[#allocation4 + $0x16c] sm:$0xf]
        %v367 = vld [vmem:[#allocation4 + $0x170] sm:$0xf]
        %v368 = vld [vmem:[#allocation4 + $0x174] sm:$0xf]
        %v369 = vld [vmem:[#allocation4 + $0x178] sm:$0xf]
        %v370 = vld [vmem:[#allocation4 + $0x17c] sm:$0xf]
        %v371 = vld [vmem:[#allocation4 + $0x180] sm:$0xf]
        %v372 = vld [vmem:[#allocation4 + $0x184] sm:$0xf]
        %v373 = vld [vmem:[%s2] sm:$0x1]
        %v375 = vperm.slane %v373, 0
        %v475 = vunpack.c.l.b16 %v275
        %v476 = vunpack.c.l.b16 %v276
        %v477 = vunpack.c.l.b16 %v277
        %v478 = vunpack.c.l.b16 %v278
        %v479 = vunpack.c.l.b16 %v279
        %v480 = vunpack.c.l.b16 %v280
        %v481 = vunpack.c.l.b16 %v281
        %v482 = vunpack.c.l.b16 %v282
        %v483 = vunpack.c.l.b16 %v283
        %v484 = vunpack.c.l.b16 %v284
        %v485 = vunpack.c.l.b16 %v285
        %v486 = vunpack.c.l.b16 %v286
        %v487 = vunpack.c.l.b16 %v287
        %v488 = vunpack.c.l.b16 %v288
        %v489 = vunpack.c.l.b16 %v289
        %v490 = vunpack.c.l.b16 %v290
        %v491 = vunpack.c.l.b16 %v291
        %v492 = vunpack.c.l.b16 %v292
        %v493 = vunpack.c.l.b16 %v293
        %v494 = vunpack.c.l.b16 %v294
        %v495 = vunpack.c.l.b16 %v295
        %v496 = vunpack.c.l.b16 %v296
        %v497 = vunpack.c.l.b16 %v297
        %v498 = vunpack.c.l.b16 %v298
        %v499 = vunpack.c.l.b16 %v299
        %v500 = vunpack.c.l.b16 %v300
        %v501 = vunpack.c.l.b16 %v301
        %v502 = vunpack.c.l.b16 %v302
        %v503 = vunpack.c.l.b16 %v303
        %v504 = vunpack.c.l.b16 %v304
        %v505 = vunpack.c.l.b16 %v305
        %v506 = vunpack.c.l.b16 %v306
        %v507 = vunpack.c.l.b16 %v307
        %v508 = vunpack.c.l.b16 %v308
        %v509 = vunpack.c.l.b16 %v309
        %v510 = vunpack.c.l.b16 %v310
        %v511 = vunpack.c.l.b16 %v311
        %v512 = vunpack.c.l.b16 %v312
        %v513 = vunpack.c.l.b16 %v313
        %v514 = vunpack.c.l.b16 %v314
        %v515 = vunpack.c.l.b16 %v315
        %v516 = vunpack.c.l.b16 %v316
        %v517 = vunpack.c.l.b16 %v317
        %v518 = vunpack.c.l.b16 %v318
        %v519 = vunpack.c.l.b16 %v319
        %v520 = vunpack.c.l.b16 %v320
        %v521 = vunpack.c.l.b16 %v321
        %v522 = vunpack.c.l.b16 %v322
        %v523 = vunpack.c.l.b16 %v323
        %v524 = vunpack.c.l.b16 %v324
        %v525 = vunpack.c.l.b16 %v325
        %v526 = vunpack.c.l.b16 %v326
        %v527 = vunpack.c.l.b16 %v327
        %v528 = vunpack.c.l.b16 %v328
        %v529 = vunpack.c.l.b16 %v329
        %v530 = vunpack.c.l.b16 %v330
        %v531 = vunpack.c.l.b16 %v331
        %v532 = vunpack.c.l.b16 %v332
        %v533 = vunpack.c.l.b16 %v333
        %v534 = vunpack.c.l.b16 %v334
        %v535 = vunpack.c.l.b16 %v335
        %v536 = vunpack.c.l.b16 %v336
        %v537 = vunpack.c.l.b16 %v337
        %v538 = vunpack.c.l.b16 %v338
        %v539 = vunpack.c.l.b16 %v339
        %v540 = vunpack.c.l.b16 %v340
        %v541 = vunpack.c.l.b16 %v341
        %v542 = vunpack.c.l.b16 %v342
        %v543 = vunpack.c.l.b16 %v343
        %v544 = vunpack.c.l.b16 %v344
        %v545 = vunpack.c.l.b16 %v345
        %v546 = vunpack.c.l.b16 %v346
        %v547 = vunpack.c.l.b16 %v347
        %v548 = vunpack.c.l.b16 %v348
        %v549 = vunpack.c.l.b16 %v349
        %v550 = vunpack.c.l.b16 %v350
        %v551 = vunpack.c.l.b16 %v351
        %v552 = vunpack.c.l.b16 %v352
        %v553 = vunpack.c.l.b16 %v353
        %v554 = vunpack.c.l.b16 %v354
        %v555 = vunpack.c.l.b16 %v355
        %v556 = vunpack.c.l.b16 %v356
        %v557 = vunpack.c.l.b16 %v357
        %v558 = vunpack.c.l.b16 %v358
        %v559 = vunpack.c.l.b16 %v359
        %v560 = vunpack.c.l.b16 %v360
        %v561 = vunpack.c.l.b16 %v361
        %v562 = vunpack.c.l.b16 %v362
        %v563 = vunpack.c.l.b16 %v363
        %v564 = vunpack.c.l.b16 %v364
        %v565 = vunpack.c.l.b16 %v365
        %v566 = vunpack.c.l.b16 %v366
        %v567 = vunpack.c.l.b16 %v367
        %v568 = vunpack.c.l.b16 %v368
        %v569 = vunpack.c.l.b16 %v369
        %v570 = vunpack.c.l.b16 %v370
        %v571 = vunpack.c.l.b16 %v371
        %v572 = vunpack.c.l.b16 %v372
        %v573 = vpack.c.b16 %v476, %v475
        %v574 = vpack.c.b16 %v478, %v477
        %v575 = vpack.c.b16 %v480, %v479
        %v576 = vpack.c.b16 %v482, %v481
        %v577 = vpack.c.b16 %v484, %v483
        %v578 = vpack.c.b16 %v486, %v485
        %v579 = vpack.c.b16 %v488, %v487
        %v580 = vpack.c.b16 %v490, %v489
        %v581 = vpack.c.b16 %v492, %v491
        %v582 = vpack.c.b16 %v494, %v493
        %v583 = vpack.c.b16 %v496, %v495
        %v584 = vpack.c.b16 %v498, %v497
        %v585 = vpack.c.b16 %v500, %v499
        %v586 = vpack.c.b16 %v502, %v501
        %v587 = vpack.c.b16 %v504, %v503
        %v588 = vpack.c.b16 %v506, %v505
        %v589 = vpack.c.b16 %v508, %v507
        %v590 = vpack.c.b16 %v510, %v509
        %v591 = vpack.c.b16 %v512, %v511
        %v592 = vpack.c.b16 %v514, %v513
        %v593 = vpack.c.b16 %v516, %v515
        %v594 = vpack.c.b16 %v518, %v517
        %v595 = vpack.c.b16 %v520, %v519
        %v596 = vpack.c.b16 %v522, %v521
        %v597 = vpack.c.b16 %v524, %v523
        %v598 = vpack.c.b16 %v526, %v525
        %v599 = vpack.c.b16 %v528, %v527
        %v600 = vpack.c.b16 %v530, %v529
        %v601 = vpack.c.b16 %v532, %v531
        %v602 = vpack.c.b16 %v534, %v533
        %v603 = vpack.c.b16 %v536, %v535
        %v604 = vpack.c.b16 %v538, %v537
        %v605 = vpack.c.b16 %v540, %v539
        %v606 = vpack.c.b16 %v542, %v541
        %v607 = vpack.c.b16 %v544, %v543
        %v608 = vpack.c.b16 %v546, %v545
        %v609 = vpack.c.b16 %v548, %v547
        %v610 = vpack.c.b16 %v550, %v549
        %v611 = vpack.c.b16 %v552, %v551
        %v612 = vpack.c.b16 %v554, %v553
        %v613 = vpack.c.b16 %v556, %v555
        %v614 = vpack.c.b16 %v558, %v557
        %v615 = vpack.c.b16 %v560, %v559
        %v616 = vpack.c.b16 %v562, %v561
        %v617 = vpack.c.b16 %v564, %v563
        %v618 = vpack.c.b16 %v566, %v565
        %v619 = vpack.c.b16 %v568, %v567
        %v620 = vpack.c.b16 %v570, %v569
        %v621 = vpack.c.b16 %v572, %v571
        %vm671 = vcmask 130048
        %v673 = vsel %vm671, %v274, 0
        %675 = vmatpush.bf16.msra.mxu0 %v580
        %676 = vmatpush.bf16.msra.mxu0 %v579
        %677 = vmatpush.bf16.msra.mxu0 %v578
        %678 = vmatpush.bf16.msra.mxu0 %v577
        %679 = vmatpush.bf16.msra.mxu0 %v576
        %680 = vmatpush.bf16.msra.mxu0 %v575
        %681 = vmatpush.bf16.msra.mxu0 %v574
        %682 = vmatpush.bf16.msra.mxu0 %v573
        %683 = vmatmul.bf16.gmra.mxu0 %v268
        %v684 = vpop.f32.mrf.mxu0
        %v685 = vadd.f32 %v375, %v684
        %v686 = vpop.f32.mrf.mxu0
        %687 = vdwg.mxu0
        %688 = vmatpush.bf16.msra.mxu0 %v588
        %689 = vmatpush.bf16.msra.mxu0 %v587
        %690 = vmatpush.bf16.msra.mxu0 %v586
        %691 = vmatpush.bf16.msra.mxu0 %v585
        %692 = vmatpush.bf16.msra.mxu0 %v584
        %693 = vmatpush.bf16.msra.mxu0 %v583
        %694 = vmatpush.bf16.msra.mxu0 %v582
        %695 = vmatpush.bf16.msra.mxu0 %v581
        %696 = vmatmul.bf16.gmra.mxu0 %v269
        %v697 = vpop.f32.mrf.mxu0
        %v698 = vadd.f32 %v685, %v697
        %v699 = vpop.f32.mrf.mxu0
        %700 = vdwg.mxu0
        %701 = vmatpush.bf16.msra.mxu0 %v596
        %702 = vmatpush.bf16.msra.mxu0 %v595
        %703 = vmatpush.bf16.msra.mxu0 %v594
        %704 = vmatpush.bf16.msra.mxu0 %v593
        %705 = vmatpush.bf16.msra.mxu0 %v592
        %706 = vmatpush.bf16.msra.mxu0 %v591
        %707 = vmatpush.bf16.msra.mxu0 %v590
        %708 = vmatpush.bf16.msra.mxu0 %v589
        %709 = vmatmul.bf16.gmra.mxu0 %v270
        %v710 = vpop.f32.mrf.mxu0
        %v711 = vadd.f32 %v698, %v710
        %v712 = vpop.f32.mrf.mxu0
        %713 = vdwg.mxu0
        %714 = vmatpush.bf16.msra.mxu0 %v604
        %715 = vmatpush.bf16.msra.mxu0 %v603
        %716 = vmatpush.bf16.msra.mxu0 %v602
        %717 = vmatpush.bf16.msra.mxu0 %v601
        %718 = vmatpush.bf16.msra.mxu0 %v600
        %719 = vmatpush.bf16.msra.mxu0 %v599
        %720 = vmatpush.bf16.msra.mxu0 %v598
        %721 = vmatpush.bf16.msra.mxu0 %v597
        %722 = vmatmul.bf16.gmra.mxu0 %v271
        %v723 = vpop.f32.mrf.mxu0
        %v724 = vadd.f32 %v711, %v723
        %v725 = vpop.f32.mrf.mxu0
        %726 = vdwg.mxu0
        %727 = vmatpush.bf16.msra.mxu0 %v612
        %728 = vmatpush.bf16.msra.mxu0 %v611
        %729 = vmatpush.bf16.msra.mxu0 %v610
        %730 = vmatpush.bf16.msra.mxu0 %v609
        %731 = vmatpush.bf16.msra.mxu0 %v608
        %732 = vmatpush.bf16.msra.mxu0 %v607
        %733 = vmatpush.bf16.msra.mxu0 %v606
        %734 = vmatpush.bf16.msra.mxu0 %v605
        %735 = vmatmul.bf16.gmra.mxu0 %v272
        %v736 = vpop.f32.mrf.mxu0
        %v737 = vadd.f32 %v724, %v736
        %v738 = vpop.f32.mrf.mxu0
        %739 = vdwg.mxu0
        %740 = vmatpush.bf16.msra.mxu0 %v620
        %741 = vmatpush.bf16.msra.mxu0 %v619
        %742 = vmatpush.bf16.msra.mxu0 %v618
        %743 = vmatpush.bf16.msra.mxu0 %v617
        %744 = vmatpush.bf16.msra.mxu0 %v616
        %745 = vmatpush.bf16.msra.mxu0 %v615
        %746 = vmatpush.bf16.msra.mxu0 %v614
        %747 = vmatpush.bf16.msra.mxu0 %v613
        %748 = vmatmul.bf16.gmra.mxu0 %v273
        %v749 = vpop.f32.mrf.mxu0
        %v750 = vadd.f32 %v737, %v749
        %v751 = vpop.f32.mrf.mxu0
        %752 = vdwg.mxu0
        %753 = vmatpush.bf16.msra.mxu0 0
        %754 = vmatpush.bf16.msra.mxu0 0
        %755 = vmatpush.bf16.msra.mxu0 0
        %756 = vmatpush.bf16.msra.mxu0 0
        %757 = vmatpush.bf16.msra.mxu0 0
        %758 = vmatpush.bf16.msra.mxu0 0
        %759 = vmatpush.bf16.msra.mxu0 0
        %760 = vmatpush.bf16.msra.mxu0 %v621
        %761 = vmatmul.bf16.gmra.mxu0 %v673
        %v762 = vpop.f32.mrf.mxu0
        %v763 = vadd.f32 %v750, %v762
        %v764 = vpop.f32.mrf.mxu0
        %765 = vdwg.mxu0
        %v766 = vmax.f32 %v763, 0.0
        %v767 = vpack.c.bf16 %v766, %v766
        %v768 = vld [vmem:[%s3] sm:$0xf]
        %v769 = vld [vmem:[%s3 + $0x4] sm:$0xf]
        %v770 = vld [vmem:[%s3 + $0x8] sm:$0xf]
        %v771 = vld [vmem:[%s3 + $0xc] sm:$0xf]
        %v772 = vld [vmem:[%s3 + $0x10] sm:$0xf]
        %v773 = vld [vmem:[%s3 + $0x14] sm:$0xf]
        %v774 = vld [vmem:[%s3 + $0x18] sm:$0xf]
        %v775 = vld [vmem:[%s3 + $0x1c] sm:$0xf]
        %v776 = vld [vmem:[%s3 + $0x20] sm:$0xf]
        %v777 = vld [vmem:[%s3 + $0x24] sm:$0xf]
        %v778 = vld [vmem:[%s3 + $0x28] sm:$0xf]
        %v779 = vld [vmem:[%s3 + $0x2c] sm:$0xf]
        %v780 = vld [vmem:[%s3 + $0x30] sm:$0xf]
        %v781 = vld [vmem:[%s3 + $0x34] sm:$0xf]
        %v782 = vld [vmem:[%s3 + $0x38] sm:$0xf]
        %v783 = vld [vmem:[%s3 + $0x3c] sm:$0xf]
        %v784 = vld [vmem:[%s4] sm:$0x1]
        %v786 = vperm.slane %v784, 0
        %v804 = vunpack.c.l.b16 %v768
        %v805 = vunpack.c.l.b16 %v769
        %v806 = vunpack.c.l.b16 %v770
        %v807 = vunpack.c.l.b16 %v771
        %v808 = vunpack.c.l.b16 %v772
        %v809 = vunpack.c.l.b16 %v773
        %v810 = vunpack.c.l.b16 %v774
        %v811 = vunpack.c.l.b16 %v775
        %v812 = vunpack.c.l.b16 %v776
        %v813 = vunpack.c.l.b16 %v777
        %v814 = vunpack.c.l.b16 %v778
        %v815 = vunpack.c.l.b16 %v779
        %v816 = vunpack.c.l.b16 %v780
        %v817 = vunpack.c.l.b16 %v781
        %v818 = vunpack.c.l.b16 %v782
        %v819 = vunpack.c.l.b16 %v783
        %v820 = vpack.c.b16 %v805, %v804
        %v821 = vpack.c.b16 %v807, %v806
        %v822 = vpack.c.b16 %v809, %v808
        %v823 = vpack.c.b16 %v811, %v810
        %v824 = vpack.c.b16 %v813, %v812
        %v825 = vpack.c.b16 %v815, %v814
        %v826 = vpack.c.b16 %v817, %v816
        %v827 = vpack.c.b16 %v819, %v818
        %836 = vmatpush.bf16.msra.mxu0 %v827
        %837 = vmatpush.bf16.msra.mxu0 %v826
        %838 = vmatpush.bf16.msra.mxu0 %v825
        %839 = vmatpush.bf16.msra.mxu0 %v824
        %840 = vmatpush.bf16.msra.mxu0 %v823
        %841 = vmatpush.bf16.msra.mxu0 %v822
        %842 = vmatpush.bf16.msra.mxu0 %v821
        %843 = vmatpush.bf16.msra.mxu0 %v820
        %844 = vmatmul.bf16.gmra.mxu0 %v767
        %v845 = vpop.f32.mrf.mxu0
        %v846 = vadd.f32 %v786, %v845
        %v847 = vpop.f32.mrf.mxu0
        %848 = vdwg.mxu0
        %v849 = vmax.f32 %v846, 0.0
        %vm850 = vcmask 80896
        %851 = vst.msk [vmem:[%s259] sm:$0xff] %vm850, %v849
        %p852 = scmp.lt.s32.totalorder %s20, 2
        %s853 = scalar_select %p852, %s20, 2
        %s854 = smul.addr %s853, 8
        %s855 = scalar_lea.vmem %s5, %s854
        // Predicated region
        $region49: #{sequential_forward.1} parent=39 // pred_check
          %p856 = pneg %p148
        $region50: #{sequential_forward.1} parent=39 // pred_check_branch
          %858 = sbr.rel (%p856) target = $region52
        $region51: #{sequential_forward.1} parent=39 // pred_region
          _
        $region52: #{sequential_forward.1} parent=39 // pred_fallthru
          _
      $region40: #{sequential_forward.1} parent=5 // pred_fallthru
        _
      %p859 = scmp.le.s32.totalorder 2, %s15
      // Predicated region
      $region53: #{sequential_forward.1} parent=5 // pred_check
        %p860 = pneg %p859
      $region54: #{sequential_forward.1} parent=5 // pred_check_branch
        %862 = sbr.rel (%p860) target = $region56
      $region55: #{sequential_forward.1} parent=5 // pred_region
        %s863 = ssub.s32 %s15, 2
        // Predicated region
        $region57: #{sequential_forward.1} parent=55 // pred_check
          %p864 = pneg %p154
        $region58: #{sequential_forward.1} parent=55 // pred_check_branch
          %866 = sbr.rel (%p864) target = $region60
        $region59: #{sequential_forward.1} parent=55 // pred_region
          %p867 = scmp.lt.s32.totalorder %s21, 2
          %s868 = scalar_select %p867, %s21, 2
          %s869 = smul.addr %s868, 8
          %s870 = scalar_lea.vmem %s5, %s869
        $region60: #{sequential_forward.1} parent=55 // pred_fallthru
          _
      $region56: #{sequential_forward.1} parent=5 // pred_fallthru
        _
    $region6: #{sequential_forward.1} parent=1 // loop_footer
      %s19 = sadd.s32 1, %s15
    $region7: #{sequential_forward.1} parent=1 // loop_footer_branch
      %14 = sbr.rel target = $region3
    $region8: #{sequential_forward.1} parent=1 // loop_exit
      _
    %871 = vsyncpa [#allocation3], 1
    %s872 = scalar_lea.sflag [#allocation3], 1
    %873 = vsyncpa %s872, 1
    %874 = vsyncpa [#allocation5], 1

</llo_original>
